<compile_context>
chip_gen: v5e
topology: v5e:2x2
jax: 0.10.0
libtpu: 0.0.40
codegen_flags: <defaults>
</compile_context>

<pallas_src>
import functools
import math

import jax
import jax.numpy as jnp
from jax.experimental import pallas as pl
from jax.experimental.pallas import tpu as pltpu


def _layer_scale_kernel(x_ref, g_ref, o_ref, *, force_fp32):
    # x_ref / o_ref: (TM, TD) row tile; g_ref: (1, TD) gamma in the compute
    # dtype -> (1, TD) sublane-broadcasts over the row tile.
    x = x_ref[...]
    g = g_ref[...]
    if force_fp32:
        o_ref[...] = (x.astype(jnp.float32) * g).astype(o_ref.dtype)
    else:
        o_ref[...] = (x * g).astype(o_ref.dtype)


def _sublane_multiple(dtype):
    # Sublane packing: f32 -> 8, bf16/f16 -> 16, int8/fp8 -> 32.
    return {4: 8, 2: 16, 1: 32}.get(jnp.dtype(dtype).itemsize, 8)


def _round_up(a, b):
    return ((a + b - 1) // b) * b


def _vmem_policy():
    """Per-generation (per-buffer tile byte budget, vmem_limit_bytes)."""
    vmem_cap = None
    try:
        vmem_cap = pltpu.get_tpu_info().vmem_capacity_bytes
    except Exception:
        vmem_cap = None
    if vmem_cap is None:
        try:
            kind = jax.devices()[0].device_kind.lower()
            vmem_cap = (64 << 20) if "v7" in kind else (128 << 20)
        except Exception:
            vmem_cap = 64 << 20
    if vmem_cap <= (64 << 20):
        # v7x: 64 MiB VMEM per TensorCore.  2 in-bufs + 2 out-bufs at 10 MiB
        # each = 40 MiB, + gamma + compiler scratch, under a 48 MiB limit.
        return 10 << 20, 48 << 20
    # v5e / v6e: 128 MiB physical VMEM -> 12 MiB per buffer, 64 MiB limit.
    return 12 << 20, 64 << 20


def layer_scale(x, gamma, *, force_fp32=False, inplace=False):
    """Pallas LayerScale: out = x * gamma, gamma shape (D,), x shape (..., D)."""
    orig_shape = x.shape
    D = orig_shape[-1]
    assert gamma.shape == (D,)
    itemsize = jnp.dtype(x.dtype).itemsize

    # Pre-cast gamma ONCE in the wrapper to the compute dtype.
    # (Note: PyTorch with a bf16 x and f32 gamma would promote to f32 without
    # force_fp32; here the non-force path keeps the computation in x.dtype.)
    compute_dtype = jnp.float32 if force_fp32 else x.dtype
    g2d = gamma.astype(compute_dtype).reshape(1, D)

    # Flatten to (rows, D).
    x2 = x.reshape(-1, D)
    R0 = x2.shape[0]
    R, D_eff = R0, D
    fold_k = 1
    pad_rows = 0

    # Lane-dense fold (unconditional): if D is not a multiple of 128, fold k
    # rows into one so the lane axis is a dense multiple of 128 (gamma pattern
    # repeats every D elements, so it tiles k times).
    if D_eff % 128 != 0:
        fold_k = math.lcm(D_eff, 128) // D_eff      # = 128 // gcd(D, 128)
        if R % fold_k != 0:
            pad_rows = fold_k - (R % fold_k)
            # TODO(synk): jnp.pad materializes one extra copy; only hit when
            # D % 128 != 0 AND rows % k != 0 (rare for CLIP hidden dims).
            x2 = jnp.pad(x2, ((0, pad_rows), (0, 0)))
        x2 = x2.reshape((R + pad_rows) // fold_k, D_eff * fold_k)
        g2d = jnp.tile(g2d, (1, fold_k))
        R, D_eff = x2.shape

    tile_budget, vmem_limit = _vmem_policy()
    sub = _sublane_multiple(x.dtype)
    row_bytes = D_eff * itemsize

    if sub * row_bytes > tile_budget:
        # Very large D: even a minimum-height row tile exceeds the budget, so
        # split the lane axis too (TD a multiple of 128).  Gamma tiles along D
        # trivially; op stays elementwise.
        tm = sub if R > sub else R
        lanes = max(128, (tile_budget // max(1, tm * itemsize)) // 128 * 128)
        td = min(D_eff, lanes)
    else:
        td = D_eff
        # Biggest sublane-aligned row tile under the per-buffer byte budget ...
        tm_budget = max(sub, (tile_budget // row_bytes) // sub * sub)
        # ... but keep >= 2 (ideally 4, evenly split) grid steps so both of
        # v7x's TensorCores get work when the row count allows it.
        if R >= 4 * sub:
            min_steps = 4
        elif R > sub:
            min_steps = 2
        else:
            min_steps = 1
        steps = max(min_steps, pl.cdiv(R, tm_budget))
        tm = _round_up(pl.cdiv(R, steps), sub)
        if tm >= R:
            tm = R          # full-extent block is always layout-legal

    grid = (pl.cdiv(R, tm), pl.cdiv(D_eff, td))
    # Partial last blocks (R % tm != 0) are fine: Pallas masks the writes of
    # the final block and the op is pure elementwise, so padded reads are inert.

    kernel = functools.partial(_layer_scale_kernel, force_fp32=force_fp32)

    out2 = pl.pallas_call(
        kernel,
        out_shape=jax.ShapeDtypeStruct((R, D_eff), x.dtype),
        grid=grid,
        in_specs=[
            pl.BlockSpec((tm, td), lambda i, j: (i, j)),
            # Constant row index -> gamma DMA'd once per lane block, resident.
            pl.BlockSpec((1, td), lambda i, j: (0, j)),
        ],
        out_specs=pl.BlockSpec((tm, td), lambda i, j: (i, j)),
        compiler_params=pltpu.CompilerParams(
            dimension_semantics=("parallel", "parallel"),
            vmem_limit_bytes=vmem_limit,
        ),
        cost_estimate=pl.CostEstimate(
            flops=R * D_eff,
            transcendentals=0,
            bytes_accessed=2 * R * D_eff * itemsize
            + D_eff * jnp.dtype(compute_dtype).itemsize,
        ),
        # PyTorch `inplace=True` (x.mul_): alias the output onto x to halve
        # peak HBM allocation.  Off by default (requires a donatable input).
        input_output_aliases=({0: 0} if inplace else {}),
    )(x2, g2d)

    if fold_k > 1:
        out2 = out2.reshape(-1, D)
        if pad_rows:
            out2 = out2[:R0]
    return out2.reshape(orig_shape)


if __name__ == "__main__":
    key = jax.random.PRNGKey(0)
    init_values = 1e-05
    kx, ky = jax.random.split(key)

    # Shapes consistent with a (batch, seq, hidden) vision-transformer block.
    B, N, Dm = 2, 8, 32
    x = jax.random.normal(kx, (B, N, Dm), dtype=jnp.float32)
    gamma = init_values * jnp.ones((Dm,), dtype=jnp.float32)

    # 1) force_fp32=False, f32 input.  D=32 folds lane-dense to 128 lanes.
    out = layer_scale(x, gamma, force_fp32=False)
    jax.block_until_ready(out)
    ref = x * gamma
    assert out.shape == x.shape and out.dtype == x.dtype
    assert jnp.allclose(out, ref, atol=1e-6, rtol=1e-6)

    # 2) force_fp32=True, bf16 input (upcast -> multiply in f32 -> cast back).
    x_bf16 = x.astype(jnp.bfloat16)
    out_f = layer_scale(x_bf16, gamma, force_fp32=True)
    jax.block_until_ready(out_f)
    ref_bf16 = (x_bf16.astype(jnp.float32) * gamma).astype(jnp.bfloat16)
    assert out_f.dtype == jnp.bfloat16
    assert jnp.allclose(out_f.astype(jnp.float32), ref_bf16.astype(jnp.float32),
                        atol=1e-2, rtol=1e-2)

    # 3) Multi-step row-tiled path (lane-dense D, >= 4 evenly split grid steps).
    B2, N2, D2 = 2, 264, 256
    x_big = jax.random.normal(ky, (B2, N2, D2), dtype=jnp.float32)
    g_big = init_values * jnp.ones((D2,), dtype=jnp.float32)
    out_big = layer_scale(x_big, g_big, force_fp32=False)
    jax.block_until_ready(out_big)
    assert jnp.allclose(out_big, x_big * g_big, atol=1e-6, rtol=1e-6)

    # 4) Pad path: D % 128 != 0 AND rows % fold_k != 0 (fold_k=4, 15 rows).
    B3, N3, D3 = 3, 5, 96
    x_odd = jax.random.normal(ky, (B3, N3, D3), dtype=jnp.float32)
    g_odd = init_values * jnp.ones((D3,), dtype=jnp.float32)
    out_odd = layer_scale(x_odd, g_odd, force_fp32=False)
    jax.block_until_ready(out_odd)
    assert out_odd.shape == x_odd.shape
    assert jnp.allclose(out_odd, x_odd * g_odd, atol=1e-6, rtol=1e-6)

    print("KERNEL_OK")
</pallas_src>

<mosaic_0001>
module attributes {stable_mosaic.version = 11 : i64} {
  func.func @_layer_scale_kernel(%arg0: i32, %arg1: i32, %arg2: memref<4x128xf32, #tpu.memory_space<vmem>>, %arg3: memref<1x128xf32, #tpu.memory_space<vmem>>, %arg4: memref<4x128xf32, #tpu.memory_space<vmem>>) attributes {dimension_semantics = [#tpu.dimension_semantics<parallel>, #tpu.dimension_semantics<parallel>], iteration_bounds = array<i64: 1, 1>, scalar_prefetch = 0 : i64, scratch_operands = 0 : i64, tpu.core_type = #tpu.core_type<tc>, window_params = [{transform_indices = @transform_0, window_bounds = array<i64: 4, 128>}, {transform_indices = @transform_1, window_bounds = array<i64: 1, 128>}, {transform_indices = @transform_2, window_bounds = array<i64: 4, 128>}]} {
    %c0 = arith.constant 0 : index
    %c0_0 = arith.constant 0 : index
    %0 = vector.load %arg2[%c0, %c0_0] : memref<4x128xf32, #tpu.memory_space<vmem>>, vector<4x128xf32>
    %c0_1 = arith.constant 0 : index
    %c0_2 = arith.constant 0 : index
    %1 = vector.load %arg3[%c0_1, %c0_2] : memref<1x128xf32, #tpu.memory_space<vmem>>, vector<1x128xf32>
    %2 = vector.broadcast %1 : vector<1x128xf32> to vector<4x128xf32>
    %3 = arith.mulf %0, %2 : vector<4x128xf32>
    %c0_3 = arith.constant 0 : index
    %c0_4 = arith.constant 0 : index
    %4 = vector.load %arg4[%c0_3, %c0_4] : memref<4x128xf32, #tpu.memory_space<vmem>>, vector<4x128xf32>
    tpu.vector_store %arg4[%c0_3, %c0_4], %3 {strides = array<i32>} : memref<4x128xf32, #tpu.memory_space<vmem>>, vector<4x128xf32>,
    return
  }
  func.func @transform_0(%arg0: i32, %arg1: i32) -> (i32, i32) {
    %c0_i32 = arith.constant 0 : i32
    return %arg0, %arg1 : i32, i32
  }
  func.func @transform_1(%arg0: i32, %arg1: i32) -> (i32, i32) {
    %c0_i32 = arith.constant 0 : i32
    %c0_i32_0 = arith.constant 0 : i32
    return %c0_i32, %arg1 : i32, i32
  }
  func.func @transform_2(%arg0: i32, %arg1: i32) -> (i32, i32) {
    %c0_i32 = arith.constant 0 : i32
    return %arg0, %arg1 : i32, i32
  }
}

</mosaic_0001>

<llo_original>
// kernel: tpu_custom_call.1
$region0: #{tpu_custom_call.1}
  #allocation0 [shape = 'u32[]', space=smem, size = 0x4, offset = 0x4, fixed_abs, tag = 'smem constant byte address 0x4 - core index']
  #allocation1 [shape = 'u32[72,128]{1,0:T(1,128)}', space=vmem, size = 0x9000, scoped, tag = 'internal scratch']
  %s0 = inlined_call_operand.hbm [shape: f32[4,128], index: 0, kind: input, shape index: {}]
  %s1 = inlined_call_operand.hbm [shape: f32[1,128], index: 1, kind: input, shape index: {}]
  %s2 = inlined_call_operand.hbm [shape: f32[4,128], index: 2, kind: output, shape index: {}]
  %s3 = sld [smem:[#allocation0]]
  $region26: #{tpu_custom_call.1} parent=0
    _
  %s5 = ssub.s32 1, %s3
  %s6 = scalar_select 0, %s5, %s3
  $region1: #{tpu_custom_call.1} parent=0
    #allocation2 [shape = 'u8[2048]{0}', space=vmem, size = 0x800, scoped, tag = 'input window, operand 0, single buffered']
    #allocation3 [shape = 's32[1]{0}', space=sflag, size = 0x4, scoped, tag = 'scoped memory for tpu_custom_call.1']
    #allocation4 [shape = 's32[1]{0}', space=sflag, size = 0x4, scoped, tag = 'scoped memory for tpu_custom_call.1']
    #allocation5 [shape = 'u8[512]{0}', space=vmem, size = 0x400, scoped, tag = 'input window, operand 1, single buffered']
    #allocation6 [shape = 's32[1]{0}', space=sflag, size = 0x4, scoped, tag = 'scoped memory for tpu_custom_call.1']
    #allocation7 [shape = 'u8[2048]{0}', space=vmem, size = 0x800, scoped, tag = 'output window, operand 0, single buffered']
    %7 = vsyncpa [#allocation3], 0
    %8 = vsyncpa [#allocation6], 0
    %9 = vsyncpa [#allocation4], 0
    // Predicated region
    $region2: #{tpu_custom_call.1} parent=1 // pred_check
      _
    $region3: #{tpu_custom_call.1} parent=1 // pred_check_branch
      %11 = sbr.rel (0) target = $region5
    $region4: #{tpu_custom_call.1} parent=1 // pred_region
      %13 = vsyncadd [#allocation3], 0
      %s15 = sshll.u32 %s0, 4
      %s16 = int_to_ptr.hbm [resolvable:$true] %s15
      %s17 = sshll.u32 [#allocation2], 4
      %s18 = int_to_ptr.vmem [resolvable:$true] %s17
      %20 = dma.hbm_to_vmem [thread:$0]  %s16, 64, %s18, [#allocation3]
    $region5: #{tpu_custom_call.1} parent=1 // pred_fallthru
      _
    // Predicated region
    $region6: #{tpu_custom_call.1} parent=1 // pred_check
      _
    $region7: #{tpu_custom_call.1} parent=1 // pred_check_branch
      %22 = sbr.rel (0) target = $region9
    $region8: #{tpu_custom_call.1} parent=1 // pred_region
      %24 = vsyncadd [#allocation6], 0
      %s26 = sshll.u32 %s1, 4
      %s27 = int_to_ptr.hbm [resolvable:$true] %s26
      %s28 = sshll.u32 [#allocation5], 4
      %s29 = int_to_ptr.vmem [resolvable:$true] %s28
      %31 = dma.hbm_to_vmem [thread:$0]  %s27, 16, %s29, [#allocation6]
    $region9: #{tpu_custom_call.1} parent=1 // pred_fallthru
      _
    // Predicated region
    $region10: #{tpu_custom_call.1} parent=1 // pred_check
      _
    $region11: #{tpu_custom_call.1} parent=1 // pred_check_branch
      %33 = sbr.rel (0) target = $region13
    $region12: #{tpu_custom_call.1} parent=1 // pred_region
      %35 = dma.done [#allocation3], 64
    $region13: #{tpu_custom_call.1} parent=1 // pred_fallthru
      _
    // Predicated region
    $region14: #{tpu_custom_call.1} parent=1 // pred_check
      _
    $region15: #{tpu_custom_call.1} parent=1 // pred_check_branch
      %37 = sbr.rel (0) target = $region17
    $region16: #{tpu_custom_call.1} parent=1 // pred_region
      %39 = dma.done [#allocation6], 16
    $region17: #{tpu_custom_call.1} parent=1 // pred_fallthru
      _
    %v40 = vld [vmem:[#allocation2] sm:$0xf]
    %v41 = vld [vmem:[#allocation5] sm:$0x1]
    %v43 = vperm.slane %v41, 0
    %v45 = vmul.f32 %v40, %v43
    %46 = vst [vmem:[#allocation7] sm:$0xf] %v45
    // Predicated region
    $region18: #{tpu_custom_call.1} parent=1 // pred_check
      _
    $region19: #{tpu_custom_call.1} parent=1 // pred_check_branch
      %48 = sbr.rel (0) target = $region21
    $region20: #{tpu_custom_call.1} parent=1 // pred_region
      %50 = vsyncadd [#allocation4], 0
      %s52 = sshll.u32 [#allocation7], 4
      %s53 = int_to_ptr.vmem [resolvable:$true] %s52
      %s54 = sshll.u32 %s2, 4
      %s55 = int_to_ptr.hbm [resolvable:$true] %s54
      %57 = dma.vmem_to_hbm [thread:$0]  %s53, 64, %s55, [#allocation4]
    $region21: #{tpu_custom_call.1} parent=1 // pred_fallthru
      _
    // Predicated region
    $region22: #{tpu_custom_call.1} parent=1 // pred_check
      _
    $region23: #{tpu_custom_call.1} parent=1 // pred_check_branch
      %59 = sbr.rel (0) target = $region25
    $region24: #{tpu_custom_call.1} parent=1 // pred_region
      %61 = dma.done [#allocation4], 64
    $region25: #{tpu_custom_call.1} parent=1 // pred_fallthru
      _
    %62 = vsyncpa [#allocation3], 1
    %63 = vsyncpa [#allocation6], 1
    %64 = vsyncpa [#allocation4], 1

</llo_original>
